<compile_context>
chip_gen: v7x
topology: tpu7x:2x2x1
jax: 0.10.0
libtpu: 0.0.40
codegen_flags: <defaults>
</compile_context>

<pallas_src>
import functools

import jax
import jax.numpy as jnp
from jax.experimental import pallas as pl
from jax.experimental.pallas import tpu as pltpu


# --------------------------------------------------------------------------
# Kernels
# --------------------------------------------------------------------------
def _gemm_bias_kernel_acc(x_ref, w_ref, b_ref, o_ref, acc_ref):
    """Tiled GEMM with bias: o = x @ w + b, K reduction over grid axis 2."""
    k = pl.program_id(2)

    @pl.when(k == 0)
    def _():
        acc_ref[...] = jnp.zeros_like(acc_ref)

    acc_ref[...] += jnp.dot(
        x_ref[...], w_ref[...], preferred_element_type=jnp.float32
    )

    @pl.when(k == pl.num_programs(2) - 1)
    def _():
        # b_ref tile is (1, tn); broadcasts over the (tm, tn) accumulator.
        o_ref[...] = (acc_ref[...] + b_ref[...].astype(jnp.float32)).astype(
            o_ref.dtype
        )


def _gemm_bias_kernel_single(x_ref, w_ref, b_ref, o_ref):
    """Single-K-step GEMM + bias: no accumulator scratch / zero-init needed."""
    acc = jnp.dot(x_ref[...], w_ref[...], preferred_element_type=jnp.float32)
    o_ref[...] = (acc + b_ref[...].astype(jnp.float32)).astype(o_ref.dtype)


# --------------------------------------------------------------------------
# Tile selection helpers
# --------------------------------------------------------------------------
def _round_up(v, m):
    return ((v + m - 1) // m) * m


def _pick_divisor_tile(size, requested, granule):
    """Largest multiple of `granule` <= min(requested, size) dividing `size`.

    `size` must itself be a multiple of `granule` (so `granule` always works).
    Used for K/N so the pre-padded weight never needs re-padding per call.
    """
    cap = min(_round_up(max(requested, granule), granule), size)
    t = cap
    while t > granule and size % t != 0:
        t -= granule
    return t


def _pick_m_tile(m, requested, granule, max_waste_frac=0.125):
    """Pick an M tile with bounded padding waste.

    Returns (tm, m_padded) with m_padded a multiple of tm.  Prefers the
    largest tile (<= requested) whose padded extent wastes at most
    `max_waste_frac` of the rows; granule-size tiles always satisfy this,
    so the loop always terminates with a valid choice.
    """
    m_aligned = _round_up(m, granule)
    cap = min(_round_up(max(requested, granule), granule), m_aligned)
    best_t, best_padded = granule, m_aligned
    t = cap
    while t >= granule:
        padded = _round_up(m_aligned, t)
        if padded <= m_aligned * (1.0 + max_waste_frac):
            return t, padded
        if padded < best_padded or (padded == best_padded and t > best_t):
            best_t, best_padded = t, padded
        t -= granule
    return best_t, best_padded


def _vmem_capacity_bytes():
    try:
        info = pltpu.get_tpu_info()
        return int(getattr(info, "vmem_capacity_bytes", 128 << 20))
    except Exception:  # conservative fallback if the query is unavailable
        return 128 << 20


# --------------------------------------------------------------------------
# Forward (jitted; all tile params / output width are static)
# --------------------------------------------------------------------------
@functools.partial(jax.jit, static_argnames=("n_out", "tm", "tn", "tk"))
def _sparse_dense_forward(x, wp, bp, *, n_out, tm, tn, tk):
    out_dtype = x.dtype
    M, K = x.shape
    Kp, Np = wp.shape

    # Match the (possibly bf16) pre-cast weight dtype; accumulation stays f32.
    if x.dtype != wp.dtype:
        x = x.astype(wp.dtype)

    itemsize = jnp.dtype(wp.dtype).itemsize
    m_granule = {4: 8, 2: 16, 1: 32}.get(itemsize, 8)

    # --- Tile selection ----------------------------------------------------
    tm, Mp = _pick_m_tile(M, tm, m_granule)
    tk = _pick_divisor_tile(Kp, tk, 128)
    tn = _pick_divisor_tile(Np, tn, 128)

    # v7x has two TensorCores: make sure a "parallel" axis has >= 2 steps.
    if Mp // tm == 1 and Np // tn == 1 and Np >= 256:
        tn = _pick_divisor_tile(Np, Np // 2, 128)

    # Only x needs per-call padding (zeros are exact); W/b were padded once.
    if (Mp, Kp) != (M, K):
        x = jnp.pad(x, ((0, Mp - M), (0, Kp - K)))

    nk = Kp // tk
    out_bytes = jnp.dtype(out_dtype).itemsize
    b_bytes = jnp.dtype(bp.dtype).itemsize

    # --- VMEM budget: double-buffered tiles + f32 accumulator --------------
    est = (
        2 * (tm * tk + tk * tn) * itemsize     # x, w tiles (double buffered)
        + 2 * tn * b_bytes                     # bias row (double buffered)
        + 2 * tm * tn * out_bytes              # output tile (double buffered)
        + (tm * tn * 4 if nk > 1 else 0)       # accumulator scratch
    )
    cap = _vmem_capacity_bytes()
    vmem_limit = int(min(max(2 * est, 32 << 20), cap * 3 // 4))
    vmem_limit = max(vmem_limit, est + (4 << 20))
    vmem_limit = min(vmem_limit, cap - (8 << 20))

    if nk == 1:
        out = pl.pallas_call(
            _gemm_bias_kernel_single,
            out_shape=jax.ShapeDtypeStruct((Mp, Np), out_dtype),
            grid_spec=pltpu.PrefetchScalarGridSpec(
                num_scalar_prefetch=0,
                grid=(Mp // tm, Np // tn),
                in_specs=[
                    pl.BlockSpec((tm, tk), lambda i, j: (i, 0)),   # x tile
                    pl.BlockSpec((tk, tn), lambda i, j: (0, j)),   # w tile
                    pl.BlockSpec((1, tn), lambda i, j: (0, j)),    # bias row
                ],
                out_specs=pl.BlockSpec((tm, tn), lambda i, j: (i, j)),
            ),
            compiler_params=pltpu.CompilerParams(
                dimension_semantics=("parallel", "parallel"),
                vmem_limit_bytes=vmem_limit,
            ),
        )(x, wp, bp)
    else:
        out = pl.pallas_call(
            _gemm_bias_kernel_acc,
            out_shape=jax.ShapeDtypeStruct((Mp, Np), out_dtype),
            grid_spec=pltpu.PrefetchScalarGridSpec(
                num_scalar_prefetch=0,
                grid=(Mp // tm, Np // tn, nk),
                in_specs=[
                    pl.BlockSpec((tm, tk), lambda i, j, k: (i, k)),  # x tile
                    pl.BlockSpec((tk, tn), lambda i, j, k: (k, j)),  # w tile
                    pl.BlockSpec((1, tn), lambda i, j, k: (0, j)),   # bias row
                ],
                out_specs=pl.BlockSpec((tm, tn), lambda i, j, k: (i, j)),
                scratch_shapes=[pltpu.VMEM((tm, tn), jnp.float32)],
            ),
            compiler_params=pltpu.CompilerParams(
                dimension_semantics=("parallel", "parallel", "arbitrary"),
                vmem_limit_bytes=vmem_limit,
            ),
        )(x, wp, bp)

    if (Mp, Np) != (M, n_out):
        out = out[:M, :n_out]
    return out


# --------------------------------------------------------------------------
# Module wrapper: one-time weight preprocessing, per-call GEMM only.
# --------------------------------------------------------------------------
class SparseDense:
    """JAX/Pallas equivalent of beyondml's SparseDense (out = x @ W + b).

    The torch sparse (COO) storage has no TPU benefit; the zero-heavy weight
    is stored densely (optionally in bf16) and the GEMM runs on the MXU.
    """

    def __init__(self, weight, bias, *, compute_dtype=None,
                 tm=512, tn=1024, tk=1024):
        w = jnp.asarray(weight)
        b = jnp.asarray(bias)
        K, N = w.shape
        assert b.shape == (N,)

        if compute_dtype is not None:
            w = w.astype(compute_dtype)

        # Pad W once to lane/sublane-friendly extents (zeros are exact).
        Kp = _round_up(K, 128)
        Np = _round_up(N, 128)
        if (Kp, Np) != (K, N):
            w = jnp.pad(w, ((0, Kp - K), (0, Np - N)))
        bp = b if Np == N else jnp.pad(b, (0, Np - N))

        self.w = w
        self.b = bp.reshape(1, Np).astype(jnp.float32)  # bias added in f32
        self.k_in = K
        self.n_out = N
        self.tm, self.tn, self.tk = int(tm), int(tn), int(tk)

    def __call__(self, x):
        assert x.ndim == 2 and x.shape[1] == self.k_in, (
            f"expected (batch, {self.k_in}) input, got {x.shape}")
        return _sparse_dense_forward(
            x, self.w, self.b,
            n_out=self.n_out, tm=self.tm, tn=self.tn, tk=self.tk)


# --------------------------------------------------------------------------
if __name__ == "__main__":
    key = jax.random.PRNGKey(0)

    # ---- Test 1: aligned shapes, ~50%-zero weight, single-K-step path. ----
    k_x, k_w, k_b, k_mask = jax.random.split(key, 4)
    batch, in_features, out_features = 8, 32, 128
    x = jax.random.normal(k_x, (batch, in_features), dtype=jnp.float32)
    w_dense = jax.random.normal(k_w, (in_features, out_features), dtype=jnp.float32)
    mask = jax.random.uniform(k_mask, (in_features, out_features)) > 0.5
    w = jnp.where(mask, w_dense, 0.0)
    b = jax.random.normal(k_b, (out_features,), dtype=jnp.float32)

    layer = SparseDense(w, b)
    out = jax.block_until_ready(layer(x))
    ref = x @ w + b
    assert out.shape == (batch, out_features)
    assert out.dtype == x.dtype
    assert jnp.allclose(out, ref, atol=1e-5, rtol=1e-5), "mismatch (test 1)"

    # ---- Test 2: ragged shapes + multi-step K reduction (f32 acc path). ---
    k_x2, k_w2, k_b2 = jax.random.split(jax.random.PRNGKey(1), 3)
    M2, K2, N2 = 10, 300, 200
    x2 = jax.random.normal(k_x2, (M2, K2), dtype=jnp.float32)
    w2 = jax.random.normal(k_w2, (K2, N2), dtype=jnp.float32)
    b2 = jax.random.normal(k_b2, (N2,), dtype=jnp.float32)
    layer2 = SparseDense(w2, b2, tk=128)   # force a 3-step K reduction
    out2 = jax.block_until_ready(layer2(x2))
    ref2 = x2 @ w2 + b2
    assert out2.shape == (M2, N2)
    assert jnp.allclose(out2, ref2, atol=1e-4, rtol=1e-4), "mismatch (test 2)"

    # ---- Test 3: opt-in bf16 compute (f32 accumulation), split-N grid. ----
    k_x3, k_w3, k_b3 = jax.random.split(jax.random.PRNGKey(2), 3)
    M3, K3, N3 = 16, 256, 384
    x3 = jax.random.normal(k_x3, (M3, K3), dtype=jnp.float32)
    w3 = jax.random.normal(k_w3, (K3, N3), dtype=jnp.float32)
    b3 = jax.random.normal(k_b3, (N3,), dtype=jnp.float32)
    layer3 = SparseDense(w3, b3, compute_dtype=jnp.bfloat16)
    out3 = jax.block_until_ready(layer3(x3))
    ref3 = (x3.astype(jnp.bfloat16).astype(jnp.float32)
            @ w3.astype(jnp.bfloat16).astype(jnp.float32)) + b3
    assert out3.shape == (M3, N3)
    assert out3.dtype == x3.dtype
    assert jnp.allclose(out3, ref3, atol=1e-2, rtol=1e-2), "mismatch (test 3)"

    print("KERNEL_OK")
</pallas_src>

<mosaic_0001>
module attributes {stable_mosaic.version = 11 : i64} {
  func.func @_gemm_bias_kernel_single(%arg0: i32, %arg1: i32, %arg2: memref<8x128xf32, #tpu.memory_space<vmem>>, %arg3: memref<128x128xf32, #tpu.memory_space<vmem>>, %arg4: memref<1x128xf32, #tpu.memory_space<vmem>>, %arg5: memref<8x128xf32, #tpu.memory_space<vmem>>) attributes {dimension_semantics = [#tpu.dimension_semantics<parallel>, #tpu.dimension_semantics<parallel>], iteration_bounds = array<i64: 1, 1>, scalar_prefetch = 0 : i64, scratch_operands = 0 : i64, tpu.core_type = #tpu.core_type<tc>, window_params = [{transform_indices = @transform_0, window_bounds = array<i64: 8, 128>}, {transform_indices = @transform_1, window_bounds = array<i64: 128, 128>}, {transform_indices = @transform_2, window_bounds = array<i64: 1, 128>}, {transform_indices = @transform_3, window_bounds = array<i64: 8, 128>}]} {
    %c0 = arith.constant 0 : index
    %c0_0 = arith.constant 0 : index
    %0 = vector.load %arg2[%c0, %c0_0] : memref<8x128xf32, #tpu.memory_space<vmem>>, vector<8x128xf32>
    %c0_1 = arith.constant 0 : index
    %c0_2 = arith.constant 0 : index
    %1 = vector.load %arg3[%c0_1, %c0_2] : memref<128x128xf32, #tpu.memory_space<vmem>>, vector<128x128xf32>
    %cst = arith.constant dense<0.000000e+00> : vector<8x128xf32>
    %2 = tpu.matmul %0, %1, %cst {dimension_numbers = #tpu.dot_dimension_numbers<[1], [0], [0], [1], [0, 0, 1, 1], [], []>} : vector<8x128xf32>, vector<128x128xf32>, vector<8x128xf32> -> vector<8x128xf32>
    %c0_3 = arith.constant 0 : index
    %c0_4 = arith.constant 0 : index
    %3 = vector.load %arg4[%c0_3, %c0_4] : memref<1x128xf32, #tpu.memory_space<vmem>>, vector<1x128xf32>
    %4 = vector.broadcast %3 : vector<1x128xf32> to vector<8x128xf32>
    %5 = arith.addf %2, %4 : vector<8x128xf32>
    %c0_5 = arith.constant 0 : index
    %c0_6 = arith.constant 0 : index
    %6 = vector.load %arg5[%c0_5, %c0_6] : memref<8x128xf32, #tpu.memory_space<vmem>>, vector<8x128xf32>
    tpu.vector_store %arg5[%c0_5, %c0_6], %5 {strides = array<i32>} : memref<8x128xf32, #tpu.memory_space<vmem>>, vector<8x128xf32>,
    return
  }
  func.func @transform_0(%arg0: i32, %arg1: i32) -> (i32, i32) {
    %c0_i32 = arith.constant 0 : i32
    %c0_i32_0 = arith.constant 0 : i32
    return %arg0, %c0_i32 : i32, i32
  }
  func.func @transform_1(%arg0: i32, %arg1: i32) -> (i32, i32) {
    %c0_i32 = arith.constant 0 : i32
    %c0_i32_0 = arith.constant 0 : i32
    return %c0_i32, %arg1 : i32, i32
  }
  func.func @transform_2(%arg0: i32, %arg1: i32) -> (i32, i32) {
    %c0_i32 = arith.constant 0 : i32
    %c0_i32_0 = arith.constant 0 : i32
    return %c0_i32, %arg1 : i32, i32
  }
  func.func @transform_3(%arg0: i32, %arg1: i32) -> (i32, i32) {
    %c0_i32 = arith.constant 0 : i32
    return %arg0, %arg1 : i32, i32
  }
}

</mosaic_0001>

<llo_original>
// kernel: _sparse_dense_forward.1
$region0: #{_sparse_dense_forward.1}
  #allocation0 [shape = 'u32[]', space=smem, size = 0x4, offset = 0x4, fixed_abs, tag = 'smem constant byte address 0x4 - core index']
  #allocation1 [shape = 'u32[144,128]{1,0:T(1,128)}', space=vmem, size = 0x12000, scoped, tag = 'internal scratch']
  %s0 = inlined_call_operand.vmem [shape: f32[8,128], index: 0, kind: input, shape index: {}]
  %s1 = inlined_call_operand.hbm [shape: f32[128,128], index: 1, kind: input, shape index: {}]
  %s2 = inlined_call_operand.vmem [shape: f32[1,128], index: 2, kind: input, shape index: {}]
  %s3 = inlined_call_operand.hbm [shape: f32[8,128], index: 3, kind: output, shape index: {}]
  %s4 = sld [smem:[#allocation0]]
  $region26: #{_sparse_dense_forward.1} parent=0
    _
  %s6 = ssub.s32 1, %s4
  %s7 = scalar_select 0, %s6, %s4
  $region1: #{_sparse_dense_forward.1} parent=0
    #allocation2 [shape = 'u8[65536]{0}', space=vmem, size = 0x10000, scoped, tag = 'input window, operand 1, single buffered']
    #allocation3 [shape = 's32[1]{0}', space=sflag, size = 0x4, scoped, tag = 'scoped memory for _sparse_dense_forward.1']
    #allocation4 [shape = 's32[1]{0}', space=sflag, size = 0x4, scoped, tag = 'scoped memory for _sparse_dense_forward.1']
    #allocation5 [shape = 'u8[4096]{0}', space=vmem, size = 0x1000, scoped, tag = 'output window, operand 0, single buffered']
    %8 = vsyncpa [#allocation3], 0
    %9 = vsyncpa [#allocation4], 0
    // Predicated region
    $region2: #{_sparse_dense_forward.1} parent=1 // pred_check
      _
    $region3: #{_sparse_dense_forward.1} parent=1 // pred_check_branch
      %11 = sbr.rel (0) target = $region5
    $region4: #{_sparse_dense_forward.1} parent=1 // pred_region
      _
    $region5: #{_sparse_dense_forward.1} parent=1 // pred_fallthru
      _
    // Predicated region
    $region6: #{_sparse_dense_forward.1} parent=1 // pred_check
      _
    $region7: #{_sparse_dense_forward.1} parent=1 // pred_check_branch
      %13 = sbr.rel (0) target = $region9
    $region8: #{_sparse_dense_forward.1} parent=1 // pred_region
      %s15 = ssub.s32 2048, 2048
      %16 = vsyncadd [#allocation3], %s15
      %s17 = sshll.u32 [#allocation2], 4
      %s18 = int_to_ptr.vmem [resolvable:$true] %s17
      %23 = dma.hbm_to_vmem [thread:$0]  %s1, 2048, %s18, [#allocation3], 128, 128, 8
    $region9: #{_sparse_dense_forward.1} parent=1 // pred_fallthru
      _
    // Predicated region
    $region10: #{_sparse_dense_forward.1} parent=1 // pred_check
      _
    $region11: #{_sparse_dense_forward.1} parent=1 // pred_check_branch
      %25 = sbr.rel (0) target = $region13
    $region12: #{_sparse_dense_forward.1} parent=1 // pred_region
      _
    $region13: #{_sparse_dense_forward.1} parent=1 // pred_fallthru
      _
    // Predicated region
    $region14: #{_sparse_dense_forward.1} parent=1 // pred_check
      _
    $region15: #{_sparse_dense_forward.1} parent=1 // pred_check_branch
      %27 = sbr.rel (0) target = $region17
    $region16: #{_sparse_dense_forward.1} parent=1 // pred_region
      %28 = dma.done [#allocation3], 2048
    $region17: #{_sparse_dense_forward.1} parent=1 // pred_fallthru
      _
    %v29 = vld [vmem:[%s0] sm:$0xff]
    %v30 = vld [vmem:[#allocation2] sm:$0xff]
    %v31 = vld [vmem:[#allocation2 + $0x8] sm:$0xff]
    %v32 = vld [vmem:[#allocation2 + $0x10] sm:$0xff]
    %v33 = vld [vmem:[#allocation2 + $0x18] sm:$0xff]
    %v34 = vld [vmem:[#allocation2 + $0x20] sm:$0xff]
    %v35 = vld [vmem:[#allocation2 + $0x28] sm:$0xff]
    %v36 = vld [vmem:[#allocation2 + $0x30] sm:$0xff]
    %v37 = vld [vmem:[#allocation2 + $0x38] sm:$0xff]
    %v38 = vld [vmem:[#allocation2 + $0x40] sm:$0xff]
    %v39 = vld [vmem:[#allocation2 + $0x48] sm:$0xff]
    %v40 = vld [vmem:[#allocation2 + $0x50] sm:$0xff]
    %v41 = vld [vmem:[#allocation2 + $0x58] sm:$0xff]
    %v42 = vld [vmem:[#allocation2 + $0x60] sm:$0xff]
    %v43 = vld [vmem:[#allocation2 + $0x68] sm:$0xff]
    %v44 = vld [vmem:[#allocation2 + $0x70] sm:$0xff]
    %v45 = vld [vmem:[#allocation2 + $0x78] sm:$0xff]
    %v46 = vld [vmem:[%s2] sm:$0x1]
    %v48 = vlaneseq
    %v49 = vshrl.u32 %v48, 7
    %v50 = vsub.s32 0, %v49
    %v51 = vrot.slane %v46, %v50
    %53 = vmatprep.subr.mxu0 0.0
    %54 = vmatpush1.msra.mxu0 %v30
    %55 = vmatprep.subr.mxu0 0.0
    %56 = vmatpush1.msra.mxu0 %v31
    %57 = vmatprep.subr.mxu0 0.0
    %58 = vmatpush1.msra.mxu0 %v32
    %59 = vmatprep.subr.mxu0 0.0
    %60 = vmatpush1.msra.mxu0 %v33
    %61 = vmatprep.subr.mxu0 0.0
    %62 = vmatpush1.msra.mxu0 %v34
    %63 = vmatprep.subr.mxu0 0.0
    %64 = vmatpush1.msra.mxu0 %v35
    %65 = vmatprep.subr.mxu0 0.0
    %66 = vmatpush1.msra.mxu0 %v36
    %67 = vmatprep.subr.mxu0 0.0
    %68 = vmatpush1.msra.mxu0 %v37
    %69 = vmatprep.subr.mxu0 0.0
    %70 = vmatpush1.msra.mxu0 %v38
    %71 = vmatprep.subr.mxu0 0.0
    %72 = vmatpush1.msra.mxu0 %v39
    %73 = vmatprep.subr.mxu0 0.0
    %74 = vmatpush1.msra.mxu0 %v40
    %75 = vmatprep.subr.mxu0 0.0
    %76 = vmatpush1.msra.mxu0 %v41
    %77 = vmatprep.subr.mxu0 0.0
    %78 = vmatpush1.msra.mxu0 %v42
    %79 = vmatprep.subr.mxu0 0.0
    %80 = vmatpush1.msra.mxu0 %v43
    %81 = vmatprep.subr.mxu0 0.0
    %82 = vmatpush1.msra.mxu0 %v44
    %83 = vmatprep.subr.mxu0 0.0
    %84 = vmatpush1.msra.mxu0 %v45
    %85 = vmatprep.subr.mxu0 0.0
    %86 = vmatpush1.msra.mxu0 0.0
    %87 = vmatprep.subr.mxu0 0.0
    %88 = vmatpush1.msra.mxu0 0.0
    %89 = vmatprep.subr.mxu0 0.0
    %90 = vmatpush1.msra.mxu0 0.0
    %91 = vmatprep.subr.mxu0 0.0
    %92 = vmatpush1.msra.mxu0 0.0
    %93 = vmatprep.subr.mxu0 0.0
    %94 = vmatpush1.msra.mxu0 0.0
    %95 = vmatprep.subr.mxu0 0.0
    %96 = vmatpush1.msra.mxu0 0.0
    %97 = vmatprep.subr.mxu0 0.0
    %98 = vmatpush1.msra.mxu0 0.0
    %99 = vmatprep.subr.mxu0 0.0
    %100 = vmatpush1.msra.mxu0 0.0
    %101 = vmatprep.subr.mxu0 0.0
    %102 = vmatpush1.msra.mxu0 0.0
    %103 = vmatprep.subr.mxu0 0.0
    %104 = vmatpush1.msra.mxu0 0.0
    %105 = vmatprep.subr.mxu0 0.0
    %106 = vmatpush1.msra.mxu0 0.0
    %107 = vmatprep.subr.mxu0 0.0
    %108 = vmatpush1.msra.mxu0 0.0
    %109 = vmatprep.subr.mxu0 0.0
    %110 = vmatpush1.msra.mxu0 0.0
    %111 = vmatprep.subr.mxu0 0.0
    %112 = vmatpush1.msra.mxu0 0.0
    %113 = vmatprep.subr.mxu0 0.0
    %114 = vmatpush1.msra.mxu0 0.0
    %115 = vmatprep.subr.mxu0 0.0
    %116 = vmatpush1.msra.mxu0 0.0
    %117 = vmatprep.mubr.f32.mxu0 0.0
    %118 = vmatmul.mubr.f32.gmra.mrb[0].mxu0 %v29
    %v119 = vpop.f32.mrb[0].mxu0
    %v120 = vadd.f32 %v51, %v119
    %v121 = vpop.f32.mrb[0].mxu0
    %122 = vdwg.mxu0
    %123 = vst [vmem:[#allocation5] sm:$0xff] %v120
    // Predicated region
    $region18: #{_sparse_dense_forward.1} parent=1 // pred_check
      _
    $region19: #{_sparse_dense_forward.1} parent=1 // pred_check_branch
      %125 = sbr.rel (0) target = $region21
    $region20: #{_sparse_dense_forward.1} parent=1 // pred_region
      %s127 = ssub.s32 128, 128
      %128 = vsyncadd [#allocation4], %s127
      %s130 = sshll.u32 [#allocation5], 4
      %s131 = int_to_ptr.vmem [resolvable:$true] %s130
      %133 = dma.vmem_to_hbm [thread:$0]  %s131, 128, %s3, [#allocation4]
    $region21: #{_sparse_dense_forward.1} parent=1 // pred_fallthru
      _
    // Predicated region
    $region22: #{_sparse_dense_forward.1} parent=1 // pred_check
      _
    $region23: #{_sparse_dense_forward.1} parent=1 // pred_check_branch
      %135 = sbr.rel (0) target = $region25
    $region24: #{_sparse_dense_forward.1} parent=1 // pred_region
      %136 = dma.done [#allocation4], 128
    $region25: #{_sparse_dense_forward.1} parent=1 // pred_fallthru
      _
    %137 = vsyncpa [#allocation3], 1
    %138 = vsyncpa [#allocation4], 1

</llo_original>
